<compile_context>
chip_gen: v5e
topology: v5e:2x2
jax: 0.10.0
libtpu: 0.0.40
codegen_flags: <defaults>
</compile_context>

<pallas_src>
import functools
import math

import jax
import jax.numpy as jnp
from jax.experimental import pallas as pl
from jax.experimental.pallas import tpu as pltpu


def lora_conv_kernel(rhs_ref, w_ref, b_ref, o_ref):
    """Fused (base + merged-LoRA) conv as one im2col matmul.

    rhs_ref : (K*K*Cin, N*H*W)  bf16  im2col patches (rows: tap-major then Cin;
                                      cols: batch-major then h, w)
    w_ref   : (Cout, K*K*Cin)   bf16  merged conv weight, one 2D tile
    b_ref   : (Cout, 1)         f32   base-conv bias
    o_ref   : (Cout, N*H*W)     f32   lane-dense output (512 = 4*128 lanes)
    """
    acc = jnp.dot(w_ref[...], rhs_ref[...], preferred_element_type=jnp.float32)
    o_ref[...] = (acc + b_ref[...]).astype(o_ref.dtype)


def prepare_lora_conv_params(w_base_hwio, b_base, w_a_hwio, w_b_ro, *, alpha, rank):
    """Weight-side prep, hoisted out of the per-call path (weights are static)."""
    scaling = alpha / rank
    K, _, Cin, Cout = w_base_hwio.shape
    # Exact merge of the LoRA branch into the base weight (eval mode, dropout=identity).
    w_eff = w_base_hwio + scaling * jnp.einsum("hwir,ro->hwio", w_a_hwio, w_b_ro)
    # (K,K,Cin,Cout) -> (K*K*Cin, Cout) row-major -> (Cout, K*K*Cin) bf16 MXU LHS.
    w2d = jnp.transpose(w_eff.reshape(K * K * Cin, Cout)).astype(jnp.bfloat16)
    bias = b_base.reshape(Cout, 1).astype(jnp.float32)
    return w2d, bias


@functools.partial(jax.jit, static_argnames=("K",))
def lora_adapter_forward(x_nchw, w2d_bf16, bias_f32, *, K=3):
    """Full LoRAAdapter forward. x is NCHW (PyTorch convention); output is NCHW."""
    N, Cin, H, W = x_nchw.shape
    Cout = w2d_bf16.shape[0]
    pad = K // 2
    KKC = K * K * Cin
    L = N * H * W                      # 512 -> multiple of 128, lane-dense output

    # ---- im2col in the wrapper (tiny at this size): (K*K*Cin, N*H*W) ----
    xp = jnp.pad(x_nchw, ((0, 0), (0, 0), (pad, pad), (pad, pad)))       # (N,Cin,Hp,Wp)
    cols = [xp[:, :, kh:kh + H, kw:kw + W]                               # (N,Cin,H,W) each
            for kh in range(K) for kw in range(K)]
    patches = jnp.stack(cols, axis=0)                                    # (KK,N,Cin,H,W)
    rhs = (jnp.transpose(patches, (0, 2, 1, 3, 4))                       # (KK,Cin,N,H,W)
           .reshape(KKC, L)
           .astype(jnp.bfloat16))

    flops = 2 * Cout * KKC * L
    bytes_accessed = rhs.size * 2 + w2d_bf16.size * 2 + bias_f32.size * 4 + Cout * L * 4

    out2d = pl.pallas_call(
        lora_conv_kernel,
        out_shape=jax.ShapeDtypeStruct((Cout, L), jnp.float32),
        grid=(1,),                                                       # single step: whole workload
        in_specs=[
            pl.BlockSpec((KKC, L), lambda i: (0, 0)),
            pl.BlockSpec((Cout, KKC), lambda i: (0, 0)),
            pl.BlockSpec((Cout, 1), lambda i: (0, 0)),
        ],
        out_specs=pl.BlockSpec((Cout, L), lambda i: (0, 0)),
        compiler_params=pltpu.CompilerParams(dimension_semantics=("arbitrary",)),
        cost_estimate=pl.CostEstimate(flops=flops, transcendentals=0,
                                      bytes_accessed=bytes_accessed),
    )(rhs, w2d_bf16, bias_f32)

    # (Cout, N*H*W) -> (Cout, N, H, W) -> NCHW (16 KiB transpose; negligible).
    return jnp.transpose(out2d.reshape(Cout, N, H, W), (1, 0, 2, 3))


# ---------------------------------------------------------------------------
# References for validation
# ---------------------------------------------------------------------------
def reference_forward(x_nchw, w_base_hwio, b_base, w_a_hwio, w_b_ro, *, alpha=1.0, rank=4):
    """Pure-JAX f32 reference with the exact module structure (base + scaled LoRA path)."""
    scaling = alpha / rank
    x_nhwc = jnp.transpose(x_nchw, (0, 2, 3, 1))
    dn = ("NHWC", "HWIO", "NHWC")
    conv = lambda x, w, p: jax.lax.conv_general_dilated(
        x, w, (1, 1), p, dimension_numbers=dn, precision=jax.lax.Precision.HIGHEST)
    base = conv(x_nhwc, w_base_hwio, "SAME") + b_base[None, None, None, :]
    a = conv(x_nhwc, w_a_hwio, "SAME")
    R, Cout = w_b_ro.shape
    lora = conv(a, w_b_ro.reshape(1, 1, R, Cout), "VALID")
    out = base + scaling * lora
    return jnp.transpose(out, (0, 3, 1, 2))


def reference_forward_bf16_operands(x_nchw, w_base_hwio, b_base, w_a_hwio, w_b_ro,
                                    *, alpha=1.0, rank=4):
    """Same math the kernel runs: merged weight, bf16-rounded operands, f32 accumulation."""
    scaling = alpha / rank
    w_eff = w_base_hwio + scaling * jnp.einsum("hwir,ro->hwio", w_a_hwio, w_b_ro)
    w_eff = w_eff.astype(jnp.bfloat16).astype(jnp.float32)
    xq = x_nchw.astype(jnp.bfloat16).astype(jnp.float32)
    x_nhwc = jnp.transpose(xq, (0, 2, 3, 1))
    dn = ("NHWC", "HWIO", "NHWC")
    out = jax.lax.conv_general_dilated(
        x_nhwc, w_eff, (1, 1), "SAME", dimension_numbers=dn,
        precision=jax.lax.Precision.HIGHEST)
    out = out + b_base[None, None, None, :]
    return jnp.transpose(out, (0, 3, 1, 2))


if __name__ == "__main__":
    # Small shapes: batch=2, Cin=4, Cout=8, H=W=16, kernel=3, rank=4, alpha=1.0
    N, Cin, Cout, H, W, K, R = 2, 4, 8, 16, 16, 3, 4
    alpha = 1.0

    key = jax.random.PRNGKey(0)
    k_x, k_wb, k_b, k_wa, k_wB = jax.random.split(key, 5)

    x = jax.random.normal(k_x, (N, Cin, H, W), dtype=jnp.float32)

    # Deterministic synthetic weights (HWIO layout for convs).
    # NOTE: PyTorch zero-inits lora_B; we use small nonzero values so the merged-weight
    # compute actually exercises the LoRA path (zero-init parity is checked below too).
    fan_in = Cin * K * K
    bound = 1.0 / math.sqrt(fan_in)
    w_base = jax.random.uniform(k_wb, (K, K, Cin, Cout), jnp.float32, -bound, bound)
    b_base = jax.random.uniform(k_b, (Cout,), jnp.float32, -bound, bound)
    w_a = jax.random.uniform(k_wa, (K, K, Cin, R), jnp.float32, -bound, bound)
    w_b = 0.05 * jax.random.normal(k_wB, (R, Cout), dtype=jnp.float32)

    # Hoisted weight prep (static weights), then the fused kernel forward.
    w2d, bias = prepare_lora_conv_params(w_base, b_base, w_a, w_b, alpha=alpha, rank=R)
    y = lora_adapter_forward(x, w2d, bias, K=K)
    y = jax.block_until_ready(y)
    assert y.shape == (N, Cout, H, W)

    # Tight check against a reference using the kernel's operand precision (bf16 ops, f32 acc).
    y_ref_bf16 = reference_forward_bf16_operands(x, w_base, b_base, w_a, w_b,
                                                 alpha=alpha, rank=R)
    assert jnp.allclose(y, y_ref_bf16, atol=1e-4, rtol=1e-4), "mismatch vs bf16-operand reference"

    # Loose check against the exact f32 module semantics (slack for bf16 operand rounding).
    y_ref = reference_forward(x, w_base, b_base, w_a, w_b, alpha=alpha, rank=R)
    assert jnp.allclose(y, y_ref, atol=5e-2, rtol=5e-2), "mismatch vs f32 reference"

    # PyTorch default-init parity: lora_B == 0  =>  output is exactly the base conv.
    w_b_zero = jnp.zeros_like(w_b)
    w2d_z, bias_z = prepare_lora_conv_params(w_base, b_base, w_a, w_b_zero, alpha=alpha, rank=R)
    y_zero = jax.block_until_ready(lora_adapter_forward(x, w2d_z, bias_z, K=K))
    y_zero_ref = reference_forward_bf16_operands(x, w_base, b_base, w_a, w_b_zero,
                                                 alpha=alpha, rank=R)
    assert jnp.allclose(y_zero, y_zero_ref, atol=1e-4, rtol=1e-4), "mismatch for zero-init lora_B"

    print("KERNEL_OK")
</pallas_src>

<mosaic_0001>
module attributes {stable_mosaic.version = 11 : i64} {
  func.func @lora_conv_kernel(%arg0: i32, %arg1: memref<36x512xbf16, #tpu.memory_space<vmem>>, %arg2: memref<8x36xbf16, #tpu.memory_space<vmem>>, %arg3: memref<8x1xf32, #tpu.memory_space<vmem>>, %arg4: memref<8x512xf32, #tpu.memory_space<vmem>>) attributes {dimension_semantics = [#tpu.dimension_semantics<arbitrary>], iteration_bounds = array<i64: 1>, scalar_prefetch = 0 : i64, scratch_operands = 0 : i64, tpu.core_type = #tpu.core_type<tc>, window_params = [{pipeline_mode = #tpu.pipeline_mode<synchronous>, transform_indices = @transform_0, window_bounds = array<i64: 36, 512>}, {pipeline_mode = #tpu.pipeline_mode<synchronous>, transform_indices = @transform_1, window_bounds = array<i64: 8, 36>}, {pipeline_mode = #tpu.pipeline_mode<synchronous>, transform_indices = @transform_2, window_bounds = array<i64: 8, 1>}, {pipeline_mode = #tpu.pipeline_mode<synchronous>, transform_indices = @transform_3, window_bounds = array<i64: 8, 512>}]} {
    %c0 = arith.constant 0 : index
    %c0_0 = arith.constant 0 : index
    %0 = vector.load %arg2[%c0, %c0_0] : memref<8x36xbf16, #tpu.memory_space<vmem>>, vector<8x36xbf16>
    %c0_1 = arith.constant 0 : index
    %c0_2 = arith.constant 0 : index
    %1 = vector.load %arg1[%c0_1, %c0_2] : memref<36x512xbf16, #tpu.memory_space<vmem>>, vector<36x512xbf16>
    %cst = arith.constant dense<0.000000e+00> : vector<8x512xf32>
    %2 = tpu.matmul %0, %1, %cst {dimension_numbers = #tpu.dot_dimension_numbers<[1], [0], [0], [1], [0, 0, 1, 1], [], []>} : vector<8x36xbf16>, vector<36x512xbf16>, vector<8x512xf32> -> vector<8x512xf32>
    %c0_3 = arith.constant 0 : index
    %c0_4 = arith.constant 0 : index
    %3 = vector.load %arg3[%c0_3, %c0_4] : memref<8x1xf32, #tpu.memory_space<vmem>>, vector<8x1xf32>
    %4 = vector.broadcast %3 : vector<8x1xf32> to vector<8x512xf32>
    %5 = arith.addf %2, %4 : vector<8x512xf32>
    %c0_5 = arith.constant 0 : index
    %c0_6 = arith.constant 0 : index
    %6 = vector.load %arg4[%c0_5, %c0_6] : memref<8x512xf32, #tpu.memory_space<vmem>>, vector<8x512xf32>
    tpu.vector_store %arg4[%c0_5, %c0_6], %5 {strides = array<i32>} : memref<8x512xf32, #tpu.memory_space<vmem>>, vector<8x512xf32>,
    return
  }
  func.func @transform_0(%arg0: i32) -> (i32, i32) {
    %c0_i32 = arith.constant 0 : i32
    %c0_i32_0 = arith.constant 0 : i32
    %c0_i32_1 = arith.constant 0 : i32
    return %c0_i32, %c0_i32_0 : i32, i32
  }
  func.func @transform_1(%arg0: i32) -> (i32, i32) {
    %c0_i32 = arith.constant 0 : i32
    %c0_i32_0 = arith.constant 0 : i32
    %c0_i32_1 = arith.constant 0 : i32
    return %c0_i32, %c0_i32_0 : i32, i32
  }
  func.func @transform_2(%arg0: i32) -> (i32, i32) {
    %c0_i32 = arith.constant 0 : i32
    %c0_i32_0 = arith.constant 0 : i32
    %c0_i32_1 = arith.constant 0 : i32
    return %c0_i32, %c0_i32_0 : i32, i32
  }
  func.func @transform_3(%arg0: i32) -> (i32, i32) {
    %c0_i32 = arith.constant 0 : i32
    %c0_i32_0 = arith.constant 0 : i32
    %c0_i32_1 = arith.constant 0 : i32
    return %c0_i32, %c0_i32_0 : i32, i32
  }
}

</mosaic_0001>

<llo_original>
// kernel: lora_adapter_forward.1
$region0: #{lora_adapter_forward.1}
  #allocation0 [shape = 'u32[]', space=smem, size = 0x4, offset = 0x4, fixed_abs, tag = 'smem constant byte address 0x4 - core index']
  #allocation1 [shape = 'u32[72,128]{1,0:T(1,128)}', space=vmem, size = 0x9000, scoped, tag = 'internal scratch']
  %s0 = inlined_call_operand.vmem [shape: bf16[36,512], index: 0, kind: input, shape index: {}]
  %s1 = inlined_call_operand.vmem [shape: bf16[8,36], index: 1, kind: input, shape index: {}]
  %s2 = inlined_call_operand.vmem [shape: f32[8,1], index: 2, kind: input, shape index: {}]
  %s3 = inlined_call_operand.vmem [shape: f32[8,512], index: 3, kind: output, shape index: {}]
  %s4 = sld [smem:[#allocation0]]
  $region22: #{lora_adapter_forward.1} parent=0
    _
  %s6 = ssub.s32 1, %s4
  %s7 = scalar_select 0, %s6, %s4
  // Predicated region
  $region2: #{lora_adapter_forward.1} parent=0 // pred_check
    _
  $region3: #{lora_adapter_forward.1} parent=0 // pred_check_branch
    %9 = sbr.rel (0) target = $region5
  $region4: #{lora_adapter_forward.1} parent=0 // pred_region
    _
  $region5: #{lora_adapter_forward.1} parent=0 // pred_fallthru
    _
  // Predicated region
  $region6: #{lora_adapter_forward.1} parent=0 // pred_check
    _
  $region7: #{lora_adapter_forward.1} parent=0 // pred_check_branch
    %11 = sbr.rel (0) target = $region9
  $region8: #{lora_adapter_forward.1} parent=0 // pred_region
    _
  $region9: #{lora_adapter_forward.1} parent=0 // pred_fallthru
    _
  // Predicated region
  $region10: #{lora_adapter_forward.1} parent=0 // pred_check
    _
  $region11: #{lora_adapter_forward.1} parent=0 // pred_check_branch
    %13 = sbr.rel (0) target = $region13
  $region12: #{lora_adapter_forward.1} parent=0 // pred_region
    _
  $region13: #{lora_adapter_forward.1} parent=0 // pred_fallthru
    _
  %v15 = vld [vmem:[%s1] sm:$0xf]
  %v16 = vld [vmem:[%s0] sm:$0xff]
  %v17 = vld [vmem:[%s0 + $0x8] sm:$0xff]
  %v18 = vld [vmem:[%s0 + $0x10] sm:$0xff]
  %v19 = vld [vmem:[%s0 + $0x18] sm:$0xff]
  %v20 = vld [vmem:[%s0 + $0x20] sm:$0xff]
  %v21 = vld [vmem:[%s0 + $0x28] sm:$0xff]
  %v22 = vld [vmem:[%s0 + $0x30] sm:$0xff]
  %v23 = vld [vmem:[%s0 + $0x38] sm:$0xff]
  %v24 = vld [vmem:[%s0 + $0x40] sm:$0x33]
  %v25 = vld [vmem:[%s0 + $0x48] sm:$0x33]
  %v26 = vld [vmem:[%s2] sm:$0xff]
  %28 = vset.pattern.permute.xlu0 0
  %29 = vperm.xlu0 %28, %v26
  %v30 = vpop.permute.xlu0 %29
  %v42 = vunpack.c.l.b16 %v16
  %v43 = vunpack.c.h.b16 %v16
  %v44 = vunpack.c.l.b16 %v17
  %v45 = vunpack.c.h.b16 %v17
  %v46 = vunpack.c.l.b16 %v18
  %v47 = vunpack.c.h.b16 %v18
  %v48 = vunpack.c.l.b16 %v19
  %v49 = vunpack.c.h.b16 %v19
  %v50 = vunpack.c.l.b16 %v20
  %v51 = vunpack.c.h.b16 %v20
  %v52 = vunpack.c.l.b16 %v21
  %v53 = vunpack.c.h.b16 %v21
  %v54 = vunpack.c.l.b16 %v22
  %v55 = vunpack.c.h.b16 %v22
  %v56 = vunpack.c.l.b16 %v23
  %v57 = vunpack.c.h.b16 %v23
  %v58 = vunpack.c.l.b16 %v24
  %v59 = vunpack.c.h.b16 %v24
  %v60 = vunpack.c.l.b16 %v25
  %v61 = vunpack.c.h.b16 %v25
  %v62 = vpack.c.b16 %v46, %v42
  %v63 = vpack.c.b16 %v47, %v43
  %v64 = vpack.c.b16 %v48, %v44
  %v65 = vpack.c.b16 %v49, %v45
  %v66 = vpack.c.b16 %v54, %v50
  %v67 = vpack.c.b16 %v55, %v51
  %v68 = vpack.c.b16 %v56, %v52
  %v69 = vpack.c.b16 %v57, %v53
  %v70 = vpack.c.b16 %v58, %v58
  %v71 = vpack.c.b16 %v59, %v59
  %v72 = vpack.c.b16 %v60, %v60
  %v73 = vpack.c.b16 %v61, %v61
  %vm82 = vcmask 293888
  %v84 = vsel %vm82, %v15, 0
  %vm86 = vcmask 1041408
  %v88 = vsel %vm86, %v70, 0
  %v91 = vsel %vm86, %v71, 0
  %v94 = vsel %vm86, %v72, 0
  %v97 = vsel %vm86, %v73, 0
  %99 = vmatpush.bf16.msra.mxu0 0
  %100 = vmatpush.bf16.msra.mxu0 0
  %101 = vmatpush.bf16.msra.mxu0 0
  %102 = vmatpush.bf16.msra.mxu0 0
  %103 = vmatpush.bf16.msra.mxu0 0
  %104 = vmatpush.bf16.msra.mxu0 %v88
  %105 = vmatpush.bf16.msra.mxu0 %v66
  %106 = vmatpush.bf16.msra.mxu0 %v62
  %107 = vmatmul.bf16.gmra.mxu0 %v84
  %v108 = vpop.f32.mrf.mxu0
  %v109 = vadd.f32 %v30, %v108
  %v110 = vpop.f32.mrf.mxu0
  %111 = vdwg.mxu0
  %112 = vmatpush.bf16.msra.mxu0 0
  %113 = vmatpush.bf16.msra.mxu0 0
  %114 = vmatpush.bf16.msra.mxu0 0
  %115 = vmatpush.bf16.msra.mxu0 0
  %116 = vmatpush.bf16.msra.mxu0 0
  %117 = vmatpush.bf16.msra.mxu0 %v91
  %118 = vmatpush.bf16.msra.mxu0 %v67
  %119 = vmatpush.bf16.msra.mxu0 %v63
  %120 = vmatmul.bf16.gmra.mxu0 %v84
  %v121 = vpop.f32.mrf.mxu0
  %v122 = vadd.f32 %v30, %v121
  %v123 = vpop.f32.mrf.mxu0
  %124 = vdwg.mxu0
  %125 = vmatpush.bf16.msra.mxu0 0
  %126 = vmatpush.bf16.msra.mxu0 0
  %127 = vmatpush.bf16.msra.mxu0 0
  %128 = vmatpush.bf16.msra.mxu0 0
  %129 = vmatpush.bf16.msra.mxu0 0
  %130 = vmatpush.bf16.msra.mxu0 %v94
  %131 = vmatpush.bf16.msra.mxu0 %v68
  %132 = vmatpush.bf16.msra.mxu0 %v64
  %133 = vmatmul.bf16.gmra.mxu0 %v84
  %v134 = vpop.f32.mrf.mxu0
  %v135 = vadd.f32 %v30, %v134
  %v136 = vpop.f32.mrf.mxu0
  %137 = vdwg.mxu0
  %138 = vmatpush.bf16.msra.mxu0 0
  %139 = vmatpush.bf16.msra.mxu0 0
  %140 = vmatpush.bf16.msra.mxu0 0
  %141 = vmatpush.bf16.msra.mxu0 0
  %142 = vmatpush.bf16.msra.mxu0 0
  %143 = vmatpush.bf16.msra.mxu0 %v97
  %144 = vmatpush.bf16.msra.mxu0 %v69
  %145 = vmatpush.bf16.msra.mxu0 %v65
  %146 = vmatmul.bf16.gmra.mxu0 %v84
  %v147 = vpop.f32.mrf.mxu0
  %v148 = vadd.f32 %v30, %v147
  %v149 = vpop.f32.mrf.mxu0
  %150 = vdwg.mxu0
  %151 = vst [vmem:[%s3] sm:$0xff] %v109
  %152 = vst [vmem:[%s3 + $0x8] sm:$0xff] %v122
  %153 = vst [vmem:[%s3 + $0x10] sm:$0xff] %v135
  %154 = vst [vmem:[%s3 + $0x18] sm:$0xff] %v148
  // Predicated region
  $region14: #{lora_adapter_forward.1} parent=0 // pred_check
    _
  $region15: #{lora_adapter_forward.1} parent=0 // pred_check_branch
    %156 = sbr.rel (0) target = $region17
  $region16: #{lora_adapter_forward.1} parent=0 // pred_region
    _
  $region17: #{lora_adapter_forward.1} parent=0 // pred_fallthru
    _
  // Predicated region
  $region18: #{lora_adapter_forward.1} parent=0 // pred_check
    _
  $region19: #{lora_adapter_forward.1} parent=0 // pred_check_branch
    %158 = sbr.rel (0) target = $region21
  $region20: #{lora_adapter_forward.1} parent=0 // pred_region
    _
  $region21: #{lora_adapter_forward.1} parent=0 // pred_fallthru
    _

</llo_original>
